<compile_context>
chip_gen: v6e
topology: v6e:2x2x1
jax: 0.10.0
libtpu: 0.0.40
codegen_flags: <defaults>
</compile_context>

<pallas_src>
import functools

import jax
import jax.numpy as jnp
from jax.experimental import pallas as pl
from jax.experimental.pallas import tpu as pltpu


# ---------------------------------------------------------------------------
# Shared in-kernel math: pooled channel sums -> sigmoid gate (fc1+ReLU, fc2).
# ---------------------------------------------------------------------------
def _se_gate(channel_sums, w1t, w2, inv_hw):
    """channel_sums: (C, 1) f32 spatial sums per channel -> (C, 1) gate.

    fc1/fc2 are the bias-free Linear layers of the SE block.  They are tiny
    (C * C//r MACs), so they run as broadcast-multiply + cross-sublane/lane
    reductions on the VPU/XLU, in layouts that match the (C, spatial) tiles.
    """
    mean = channel_sums * inv_hw                                        # (C, 1)
    # fc1: y1[r] = relu(sum_c W1[r, c] * mean[c]);  w1t = W1.T : (C, C//r)
    y1 = jnp.maximum(jnp.sum(w1t * mean, axis=0, keepdims=True), 0.0)   # (1, C//r)
    # fc2: g[c] = sigmoid(sum_r W2[c, r] * y1[r]);  w2  = W2   : (C, C//r)
    return jax.nn.sigmoid(jnp.sum(w2 * y1, axis=1, keepdims=True))      # (C, 1)


# ---------------------------------------------------------------------------
# Kernel 1: VMEM-resident path.  One grid step per batch element; the whole
# (C, H*W) feature map sits in VMEM, so x is read once and written once.
# ---------------------------------------------------------------------------
def _se_resident_kernel(x_ref, w1t_ref, w2_ref, o_ref, *, inv_hw):
    x = x_ref[...].astype(jnp.float32)                                  # (C, HW)
    gate = _se_gate(jnp.sum(x, axis=-1, keepdims=True),
                    w1t_ref[...], w2_ref[...], inv_hw)
    o_ref[...] = (x * gate).astype(o_ref.dtype)


# ---------------------------------------------------------------------------
# Kernel 2: spatially tiled two-pass path.
# grid = (B, 2, n_tiles): axis 1 is the pass (0 = pooling, 1 = rescale),
# axis 2 is the spatial tile.  Pooled sums and the gate persist in VMEM scratch.
# ---------------------------------------------------------------------------
def _se_tiled_kernel(x_ref, w1t_ref, w2_ref, o_ref, sum_ref, gate_ref,
                     *, inv_hw, n_s):
    p = pl.program_id(1)
    s = pl.program_id(2)

    @pl.when(jnp.logical_and(p == 0, s == 0))
    def _():
        sum_ref[...] = jnp.zeros_like(sum_ref)

    @pl.when(p == 0)
    def _():
        sum_ref[...] += jnp.sum(x_ref[...].astype(jnp.float32), axis=-1,
                                keepdims=True)

    @pl.when(jnp.logical_and(p == 0, s == n_s - 1))
    def _():
        gate_ref[...] = _se_gate(sum_ref[...], w1t_ref[...], w2_ref[...], inv_hw)

    @pl.when(p == 1)
    def _():
        o_ref[...] = (x_ref[...].astype(jnp.float32)
                      * gate_ref[...]).astype(o_ref.dtype)


# ---------------------------------------------------------------------------
# Host-side wrapper (no data copies: only free reshapes).
# ---------------------------------------------------------------------------
def _pick_spatial_tile(hw, c, itemsize, tile_budget_bytes=2 * 1024 * 1024):
    # Largest lane-dense tile that divides H*W and keeps a (C, tile) block
    # within budget (Pallas double-buffers the input and output blocks).
    for ts in (2048, 1024, 512, 256, 128):
        if hw % ts == 0 and c * ts * itemsize <= tile_budget_bytes:
            return ts
    return hw   # ragged spatial size: fall back to one full-extent block


def se_block_forward(x_nchw, w1t, w2, *,
                     max_resident_bytes=2 * 1024 * 1024, spatial_tile=None):
    """SEBlock forward.

    x_nchw: (B, C, H, W)   (PyTorch layout, consumed directly)
    w1t:    (C, C//r)      = fc1.weight.T  (bias-free)
    w2:     (C, C//r)      = fc2.weight    (bias-free)
    Returns (B, C, H, W).
    """
    B, C, H, W = x_nchw.shape
    Cr = w1t.shape[1]
    assert w1t.shape == (C, Cr) and w2.shape == (C, Cr)
    HW = H * W
    x = x_nchw.reshape(B, C, HW)       # free view; channels stay sublane-major
    itemsize = x.dtype.itemsize
    inv_hw = 1.0 / float(HW)

    if spatial_tile is None and C * HW * itemsize <= max_resident_bytes:
        out = pl.pallas_call(
            functools.partial(_se_resident_kernel, inv_hw=inv_hw),
            out_shape=jax.ShapeDtypeStruct((B, C, HW), x.dtype),
            grid_spec=pltpu.PrefetchScalarGridSpec(
                num_scalar_prefetch=0,
                grid=(B,),
                in_specs=[
                    pl.BlockSpec((None, C, HW), lambda b: (b, 0, 0)),
                    pl.BlockSpec((C, Cr), lambda b: (0, 0)),
                    pl.BlockSpec((C, Cr), lambda b: (0, 0)),
                ],
                out_specs=pl.BlockSpec((None, C, HW), lambda b: (b, 0, 0)),
            ),
            compiler_params=pltpu.CompilerParams(
                dimension_semantics=("parallel",)),
        )(x, w1t, w2)
    else:
        ts = (spatial_tile if spatial_tile is not None
              else _pick_spatial_tile(HW, C, itemsize))
        assert HW % ts == 0, (HW, ts)
        n_s = HW // ts
        # Output index map: during the pooling pass (p == 0) the output block
        # index is pinned to tile 0, so no garbage block is ever flushed; the
        # first rescale step (p == 1, s == 0) overwrites that buffer before
        # its only write-back.
        out = pl.pallas_call(
            functools.partial(_se_tiled_kernel, inv_hw=inv_hw, n_s=n_s),
            out_shape=jax.ShapeDtypeStruct((B, C, HW), x.dtype),
            grid_spec=pltpu.PrefetchScalarGridSpec(
                num_scalar_prefetch=0,
                grid=(B, 2, n_s),
                in_specs=[
                    pl.BlockSpec((None, C, ts), lambda b, p, s: (b, 0, s)),
                    pl.BlockSpec((C, Cr), lambda b, p, s: (0, 0)),
                    pl.BlockSpec((C, Cr), lambda b, p, s: (0, 0)),
                ],
                out_specs=pl.BlockSpec((None, C, ts),
                                       lambda b, p, s: (b, 0, s * p)),
                scratch_shapes=[pltpu.VMEM((C, 1), jnp.float32),   # channel sums
                                pltpu.VMEM((C, 1), jnp.float32)],  # sigmoid gate
            ),
            compiler_params=pltpu.CompilerParams(
                dimension_semantics=("parallel", "arbitrary", "arbitrary")),
        )(x, w1t, w2)
    return out.reshape(B, C, H, W)


# ---------------------------------------------------------------------------
# Pure-JAX reference and deterministic parameter init.
# ---------------------------------------------------------------------------
def se_block_ref(x_nchw, w1t, w2):
    y = jnp.mean(x_nchw, axis=(2, 3))                       # (B, C)
    y = jnp.maximum(y @ w1t, 0.0)                           # (B, C//r)
    y = jax.nn.sigmoid(y @ w2.T)                            # (B, C)
    return x_nchw * y[:, :, None, None]


def init_se_params(channel, r=16, seed=42):
    cr = channel // r
    k1, k2 = jax.random.split(jax.random.PRNGKey(seed))
    w1 = jax.random.normal(k1, (cr, channel), jnp.float32) / jnp.sqrt(channel)
    w2 = jax.random.normal(k2, (channel, cr), jnp.float32) / jnp.sqrt(cr)
    # fc1 weight stored pre-transposed (C, C//r) so the kernel needs no
    # per-call transpose; fc2 weight is already (C, C//r) in torch layout.
    return {"w1t": w1.T, "w2": w2}


if __name__ == "__main__":
    # SEBlock(channel=128, r=16): channel must be a multiple of r.
    B, C, H, W = 2, 128, 16, 16
    x = jax.random.normal(jax.random.PRNGKey(0), (B, C, H, W), jnp.float32)
    params = init_se_params(C, r=16, seed=42)

    ref = se_block_ref(x, params["w1t"], params["w2"])

    # 1) Default: fused VMEM-resident path (one read + one write of x).
    out = se_block_forward(x, params["w1t"], params["w2"])
    out = jax.block_until_ready(out)
    assert out.shape == (B, C, H, W), out.shape
    assert bool(jnp.all(jnp.isfinite(out)))
    assert bool(jnp.allclose(out, ref, rtol=1e-4, atol=1e-4)), \
        float(jnp.max(jnp.abs(out - ref)))

    # 2) Force the spatially tiled two-pass path (used automatically when the
    #    feature map is too large to keep VMEM-resident).
    out2 = se_block_forward(x, params["w1t"], params["w2"],
                            max_resident_bytes=0, spatial_tile=128)
    out2 = jax.block_until_ready(out2)
    assert bool(jnp.allclose(out2, ref, rtol=1e-4, atol=1e-4)), \
        float(jnp.max(jnp.abs(out2 - ref)))

    print("KERNEL_OK")
</pallas_src>

<mosaic_0001>
module attributes {stable_mosaic.version = 11 : i64} {
  func.func @_se_resident_kernel(%arg0: i32, %arg1: memref<1x128x256xf32, #tpu.memory_space<vmem>>, %arg2: memref<128x8xf32, #tpu.memory_space<vmem>>, %arg3: memref<128x8xf32, #tpu.memory_space<vmem>>, %arg4: memref<1x128x256xf32, #tpu.memory_space<vmem>>) attributes {dimension_semantics = [#tpu.dimension_semantics<parallel>], iteration_bounds = array<i64: 2>, scalar_prefetch = 0 : i64, scratch_operands = 0 : i64, tpu.core_type = #tpu.core_type<tc>, window_params = [{transform_indices = @transform_0, window_bounds = array<i64: 1, 128, 256>}, {pipeline_mode = #tpu.pipeline_mode<synchronous>, transform_indices = @transform_1, window_bounds = array<i64: 128, 8>}, {pipeline_mode = #tpu.pipeline_mode<synchronous>, transform_indices = @transform_2, window_bounds = array<i64: 128, 8>}, {transform_indices = @transform_3, window_bounds = array<i64: 1, 128, 256>}]} {
    %c0 = arith.constant 0 : index
    %c0_0 = arith.constant 0 : index
    %c0_1 = arith.constant 0 : index
    %0 = vector.load %arg1[%c0, %c0_0, %c0_1] : memref<1x128x256xf32, #tpu.memory_space<vmem>>, vector<1x128x256xf32>
    %1 = vector.shape_cast %0 : vector<1x128x256xf32> to vector<128x256xf32>
    %cst = arith.constant dense<0.000000e+00> : vector<128xf32>
    %2 = vector.multi_reduction <add>, %1, %cst [1] : vector<128x256xf32> to vector<128xf32>
    %3 = vector.shape_cast %2 : vector<128xf32> to vector<128x1xf32>
    %c0_2 = arith.constant 0 : index
    %c0_3 = arith.constant 0 : index
    %4 = vector.load %arg2[%c0_2, %c0_3] : memref<128x8xf32, #tpu.memory_space<vmem>>, vector<128x8xf32>
    %c0_4 = arith.constant 0 : index
    %c0_5 = arith.constant 0 : index
    %5 = vector.load %arg3[%c0_4, %c0_5] : memref<128x8xf32, #tpu.memory_space<vmem>>, vector<128x8xf32>
    %cst_6 = arith.constant 3.906250e-03 : f32
    %6 = vector.broadcast %cst_6 : f32 to vector<128x1xf32>
    %7 = arith.mulf %3, %6 : vector<128x1xf32>
    %8 = vector.broadcast %7 : vector<128x1xf32> to vector<128x8xf32>
    %9 = arith.mulf %4, %8 : vector<128x8xf32>
    %cst_7 = arith.constant dense<0.000000e+00> : vector<8xf32>
    %10 = vector.multi_reduction <add>, %9, %cst_7 [0] : vector<128x8xf32> to vector<8xf32>
    %11 = vector.shape_cast %10 : vector<8xf32> to vector<1x8xf32>
    %cst_8 = arith.constant 0.000000e+00 : f32
    %12 = vector.broadcast %cst_8 : f32 to vector<1x8xf32>
    %13 = arith.maximumf %11, %12 : vector<1x8xf32>
    %14 = vector.broadcast %13 : vector<1x8xf32> to vector<128x8xf32>
    %15 = arith.mulf %5, %14 : vector<128x8xf32>
    %cst_9 = arith.constant dense<0.000000e+00> : vector<128xf32>
    %16 = vector.multi_reduction <add>, %15, %cst_9 [1] : vector<128x8xf32> to vector<128xf32>
    %17 = vector.shape_cast %16 : vector<128xf32> to vector<128x1xf32>
    %18 = arith.negf %17 : vector<128x1xf32>
    %19 = math.exp %18 : vector<128x1xf32>
    %cst_10 = arith.constant 1.000000e+00 : f32
    %20 = vector.broadcast %cst_10 : f32 to vector<128x1xf32>
    %21 = arith.addf %20, %19 : vector<128x1xf32>
    %22 = arith.divf %20, %21 : vector<128x1xf32>
    %23 = vector.broadcast %22 : vector<128x1xf32> to vector<128x256xf32>
    %24 = arith.mulf %1, %23 : vector<128x256xf32>
    %c0_11 = arith.constant 0 : index
    %c0_12 = arith.constant 0 : index
    %c0_13 = arith.constant 0 : index
    %25 = vector.load %arg4[%c0_11, %c0_12, %c0_13] : memref<1x128x256xf32, #tpu.memory_space<vmem>>, vector<1x128x256xf32>
    %26 = vector.shape_cast %25 : vector<1x128x256xf32> to vector<128x256xf32>
    %27 = vector.shape_cast %24 : vector<128x256xf32> to vector<1x128x256xf32>
    tpu.vector_store %arg4[%c0_11, %c0_12, %c0_13], %27 {strides = array<i32>} : memref<1x128x256xf32, #tpu.memory_space<vmem>>, vector<1x128x256xf32>,
    return
  }
  func.func @transform_0(%arg0: i32) -> (i32, i32, i32) {
    %c0_i32 = arith.constant 0 : i32
    %c0_i32_0 = arith.constant 0 : i32
    %c0_i32_1 = arith.constant 0 : i32
    return %arg0, %c0_i32, %c0_i32_0 : i32, i32, i32
  }
  func.func @transform_1(%arg0: i32) -> (i32, i32) {
    %c0_i32 = arith.constant 0 : i32
    %c0_i32_0 = arith.constant 0 : i32
    %c0_i32_1 = arith.constant 0 : i32
    return %c0_i32, %c0_i32_0 : i32, i32
  }
  func.func @transform_2(%arg0: i32) -> (i32, i32) {
    %c0_i32 = arith.constant 0 : i32
    %c0_i32_0 = arith.constant 0 : i32
    %c0_i32_1 = arith.constant 0 : i32
    return %c0_i32, %c0_i32_0 : i32, i32
  }
  func.func @transform_3(%arg0: i32) -> (i32, i32, i32) {
    %c0_i32 = arith.constant 0 : i32
    %c0_i32_0 = arith.constant 0 : i32
    %c0_i32_1 = arith.constant 0 : i32
    return %arg0, %c0_i32, %c0_i32_0 : i32, i32, i32
  }
}

</mosaic_0001>

<llo_original>
// kernel: tpu_custom_call.1
$region0: #{tpu_custom_call.1}
  #allocation0 [shape = 'u32[]', space=smem, size = 0x4, offset = 0x4, fixed_abs, tag = 'smem constant byte address 0x4 - core index']
  #allocation1 [shape = 'u32[144,128]{1,0:T(1,128)}', space=vmem, size = 0x12000, scoped, tag = 'internal scratch']
  %s0 = inlined_call_operand.hbm [shape: f32[2,128,256], index: 0, kind: input, shape index: {}]
  %s1 = inlined_call_operand.vmem [shape: f32[128,8], index: 1, kind: input, shape index: {}]
  %s2 = inlined_call_operand.vmem [shape: f32[128,8], index: 2, kind: input, shape index: {}]
  %s3 = inlined_call_operand.hbm [shape: f32[2,128,256], index: 3, kind: output, shape index: {}]
  %s4 = sld [smem:[#allocation0]]
  $region49: #{tpu_custom_call.1} parent=0
    _
  %s6 = ssub.s32 1, %s4
  %s7 = scalar_select 0, %s6, %s4
  $region1: #{tpu_custom_call.1} parent=0
    #allocation2 [shape = 'u8[262144]{0}', space=vmem, size = 0x40000, scoped, tag = 'input window, operand 0']
    #allocation3 [shape = 's32[2]{0}', space=sflag, size = 0x8, scoped, tag = 'scoped memory for tpu_custom_call.1']
    #allocation4 [shape = 's32[2]{0}', space=sflag, size = 0x8, scoped, tag = 'scoped memory for tpu_custom_call.1']
    #allocation5 [shape = 'u8[262144]{0}', space=vmem, size = 0x40000, scoped, tag = 'output window, operand 0']
    %8 = vsyncpa [#allocation3], 0
    %s9 = scalar_lea.sflag [#allocation3], 1
    %10 = vsyncpa %s9, 0
    %11 = vsyncpa [#allocation4], 0
    %s12 = scalar_lea.sflag [#allocation4], 1
    %13 = vsyncpa %s12, 0
    loop: start=0, step=1, limit=4
    $region2: #{tpu_custom_call.1} parent=1 // loop_pre_header
      _
    $region3: #{tpu_custom_call.1} parent=1 // loop_header
      %s15 = sphi 0, %s19
      %p16 = scmp.ge.s32.totalorder %s15, 4
      %s25 = sphi 0, %s27
      %s28 = sphi 0, %s25
      %s29 = sphi 0, %s28
      %s45 = sphi 0, %s29
      %s49 = sphi 0, %s49
      %s51 = sphi 0, %s49
      %s52 = sphi 0, %s51
      %s66 = sphi 0, %s52
      %s70 = sphi 0, %s70
      %s72 = sphi 0, %s70
      %s73 = sphi 0, %s72
      %s87 = sphi 0, %s73
      %s93 = sphi 0, %s95
      %s96 = sphi 0, %s93
      %s97 = sphi 0, %s96
      %s113 = sphi 0, %s97
    $region4: #{tpu_custom_call.1} parent=1 // loop_header_branch
      %18 = sbr.rel (%p16) target = $region8
    $region5: #{tpu_custom_call.1} parent=1 // loop_body
      %s20 = ssub.s32 %s15, 1
      %s21 = ssub.s32 %s15, 2
      %s22 = sadd.s32 %s15, 1
      %s23 = ssub.s32 %s15, %s22
      %p24 = scmp.eq.s32.totalorder %s23, 0
      %s26 = sadd.s32 %s25, 1
      %s27 = scalar_select %p24, %s25, %s26
      %p30 = pneg %p24
      %p31 = scmp.eq.s32.totalorder %s15, 1
      %p32 = por %p30, %p31
      %p33 = scmp.ne.s32.totalorder %s25, %s28
      %p34 = scmp.eq.s32.totalorder %s15, 0
      %p35 = por %p33, %p34
      %p36 = scmp.ne.s32.totalorder %s25, %s28
      %p37 = scmp.eq.s32.totalorder %s20, 1
      %p38 = por %p36, %p37
      %p39 = scmp.ne.s32.totalorder %s28, %s29
      %p40 = scmp.eq.s32.totalorder %s20, 0
      %p41 = por %p39, %p40
      %p42 = scmp.ne.s32.totalorder %s28, %s29
      %p43 = scmp.eq.s32.totalorder %s21, 1
      %p44 = por %p42, %p43
      %p46 = scmp.ne.s32.totalorder %s29, %s45
      %p47 = scmp.eq.s32.totalorder %s21, 0
      %p48 = por %p46, %p47
      %s50 = sadd.s32 %s49, 1
      %p53 = scmp.eq.s32.totalorder %s15, 1
      %p54 = scmp.ne.s32.totalorder %s49, %s51
      %p55 = scmp.eq.s32.totalorder %s15, 0
      %p56 = por %p54, %p55
      %p57 = scmp.ne.s32.totalorder %s49, %s51
      %p58 = scmp.eq.s32.totalorder %s20, 1
      %p59 = por %p57, %p58
      %p60 = scmp.ne.s32.totalorder %s51, %s52
      %p61 = scmp.eq.s32.totalorder %s20, 0
      %p62 = por %p60, %p61
      %p63 = scmp.ne.s32.totalorder %s51, %s52
      %p64 = scmp.eq.s32.totalorder %s21, 1
      %p65 = por %p63, %p64
      %p67 = scmp.ne.s32.totalorder %s52, %s66
      %p68 = scmp.eq.s32.totalorder %s21, 0
      %p69 = por %p67, %p68
      %s71 = sadd.s32 %s70, 1
      %p74 = scmp.eq.s32.totalorder %s15, 1
      %p75 = scmp.ne.s32.totalorder %s70, %s72
      %p76 = scmp.eq.s32.totalorder %s15, 0
      %p77 = por %p75, %p76
      %p78 = scmp.ne.s32.totalorder %s70, %s72
      %p79 = scmp.eq.s32.totalorder %s20, 1
      %p80 = por %p78, %p79
      %p81 = scmp.ne.s32.totalorder %s72, %s73
      %p82 = scmp.eq.s32.totalorder %s20, 0
      %p83 = por %p81, %p82
      %p84 = scmp.ne.s32.totalorder %s72, %s73
      %p85 = scmp.eq.s32.totalorder %s21, 1
      %p86 = por %p84, %p85
      %p88 = scmp.ne.s32.totalorder %s73, %s87
      %p89 = scmp.eq.s32.totalorder %s21, 0
      %p90 = por %p88, %p89
      %s91 = ssub.s32 %s15, %s22
      %p92 = scmp.eq.s32.totalorder %s91, 0
      %s94 = sadd.s32 %s93, 1
      %s95 = scalar_select %p92, %s93, %s94
      %p98 = pneg %p92
      %p99 = scmp.eq.s32.totalorder %s15, 1
      %p100 = por %p98, %p99
      %p101 = scmp.ne.s32.totalorder %s93, %s96
      %p102 = scmp.eq.s32.totalorder %s15, 0
      %p103 = por %p101, %p102
      %p104 = scmp.ne.s32.totalorder %s93, %s96
      %p105 = scmp.eq.s32.totalorder %s20, 1
      %p106 = por %p104, %p105
      %p107 = scmp.ne.s32.totalorder %s96, %s97
      %p108 = scmp.eq.s32.totalorder %s20, 0
      %p109 = por %p107, %p108
      %p110 = scmp.ne.s32.totalorder %s96, %s97
      %p111 = scmp.eq.s32.totalorder %s21, 1
      %p112 = por %p110, %p111
      %p114 = scmp.ne.s32.totalorder %s97, %s113
      %p115 = scmp.eq.s32.totalorder %s21, 0
      %p116 = por %p114, %p115
      %p117 = scmp.le.s32.totalorder 1, %s15
      %p118 = scmp.lt.s32.totalorder %s15, 3
      %p119 = pnand %p117, %p118
      %p120 = pneg %p119
      // Predicated region
      $region9: #{tpu_custom_call.1} parent=5 // pred_check
        _
      $region10: #{tpu_custom_call.1} parent=5 // pred_check_branch
        %122 = sbr.rel (%p119) target = $region12
      $region11: #{tpu_custom_call.1} parent=5 // pred_region
        %s123 = ssub.s32 %s15, 1
        // Predicated region
        $region13: #{tpu_custom_call.1} parent=11 // pred_check
          %p124 = pneg %p62
        $region14: #{tpu_custom_call.1} parent=11 // pred_check_branch
          %126 = sbr.rel (%p124) target = $region16
        $region15: #{tpu_custom_call.1} parent=11 // pred_region
          _
        $region16: #{tpu_custom_call.1} parent=11 // pred_fallthru
          _
        // Predicated region
        $region17: #{tpu_custom_call.1} parent=11 // pred_check
          %p127 = pneg %p83
        $region18: #{tpu_custom_call.1} parent=11 // pred_check_branch
          %129 = sbr.rel (%p127) target = $region20
        $region19: #{tpu_custom_call.1} parent=11 // pred_region
          _
        $region20: #{tpu_custom_call.1} parent=11 // pred_fallthru
          _
      $region12: #{tpu_custom_call.1} parent=5 // pred_fallthru
        _
      %p130 = scmp.lt.s32.totalorder %s15, 2
      // Predicated region
      $region21: #{tpu_custom_call.1} parent=5 // pred_check
        %p131 = pneg %p130
      $region22: #{tpu_custom_call.1} parent=5 // pred_check_branch
        %133 = sbr.rel (%p131) target = $region24
      $region23: #{tpu_custom_call.1} parent=5 // pred_region
        // Predicated region
        $region25: #{tpu_custom_call.1} parent=23 // pred_check
          %p134 = pneg %p35
        $region26: #{tpu_custom_call.1} parent=23 // pred_check_branch
          %136 = sbr.rel (%p134) target = $region28
        $region27: #{tpu_custom_call.1} parent=23 // pred_region
          %s137 = sand.u32 %s25, 1
          %s138 = scalar_lea.sflag [#allocation3], %s137
          %s139 = sand.u32 %s25, 1
          %s140 = smul.addr %s139, 256
          %s141 = scalar_lea.vmem [#allocation2], %s140
          %s143 = ssub.s32 4096, 4096
          %144 = vsyncadd %s138, %s143
          %s145 = smul.addr %s15, 32
          %s146 = smul.addr %s145, 128
          %s147 = scalar_lea.hbm %s0, %s146
          %s148 = sshll.u32 %s141, 4
          %s149 = int_to_ptr.vmem [resolvable:$true] %s148
          %154 = dma.hbm_to_vmem [thread:$0]  %s147, 4096, %s149, %s138, 256, 256, 16
        $region28: #{tpu_custom_call.1} parent=23 // pred_fallthru
          _
      $region24: #{tpu_custom_call.1} parent=5 // pred_fallthru
        _
      %p155 = scmp.le.s32.totalorder 1, %s15
      %p156 = scmp.lt.s32.totalorder %s15, 3
      %p157 = pnand %p155, %p156
      %p158 = pneg %p157
      // Predicated region
      $region29: #{tpu_custom_call.1} parent=5 // pred_check
        _
      $region30: #{tpu_custom_call.1} parent=5 // pred_check_branch
        %160 = sbr.rel (%p157) target = $region32
      $region31: #{tpu_custom_call.1} parent=5 // pred_region
        %s161 = ssub.s32 %s15, 1
        %s162 = sand.u32 %s28, 1
        %s163 = scalar_lea.sflag [#allocation3], %s162
        %s164 = sand.u32 %s28, 1
        %s165 = smul.addr %s164, 256
        %s166 = scalar_lea.vmem [#allocation2], %s165
        // Predicated region
        $region33: #{tpu_custom_call.1} parent=31 // pred_check
          %p167 = pneg %p41
        $region34: #{tpu_custom_call.1} parent=31 // pred_check_branch
          %169 = sbr.rel (%p167) target = $region36
        $region35: #{tpu_custom_call.1} parent=31 // pred_region
          %170 = dma.done %s163, 4096
        $region36: #{tpu_custom_call.1} parent=31 // pred_fallthru
          _
        %s171 = sand.u32 %s28, 1
        %s172 = scalar_lea.sflag [#allocation3], %s171
        %s173 = sand.u32 %s28, 1
        %s174 = smul.addr %s173, 256
        %s175 = scalar_lea.vmem [#allocation2], %s174
        %p176 = pneg %p41
        %p177 = pneg %p38
        %p178 = pneg %p62
        %p179 = pneg %p59
        %p180 = pneg %p83
        %p181 = pneg %p80
        %p182 = pneg %p109
        %p183 = pneg %p106
        %s184 = sand.u32 %s96, 1
        %s185 = scalar_lea.sflag [#allocation4], %s184
        %s186 = sand.u32 %s96, 1
        %s187 = smul.addr %s186, 256
        %s188 = scalar_lea.vmem [#allocation5], %s187
        %v189 = vld [vmem:[%s166] sm:$0xff]
        %v190 = vld [vmem:[%s166 + $0x8] sm:$0xff]
        %v191 = vld [vmem:[%s166 + $0x10] sm:$0xff]
        %v192 = vld [vmem:[%s166 + $0x18] sm:$0xff]
        %v193 = vld [vmem:[%s166 + $0x20] sm:$0xff]
        %v194 = vld [vmem:[%s166 + $0x28] sm:$0xff]
        %v195 = vld [vmem:[%s166 + $0x30] sm:$0xff]
        %v196 = vld [vmem:[%s166 + $0x38] sm:$0xff]
        %v197 = vld [vmem:[%s166 + $0x40] sm:$0xff]
        %v198 = vld [vmem:[%s166 + $0x48] sm:$0xff]
        %v199 = vld [vmem:[%s166 + $0x50] sm:$0xff]
        %v200 = vld [vmem:[%s166 + $0x58] sm:$0xff]
        %v201 = vld [vmem:[%s166 + $0x60] sm:$0xff]
        %v202 = vld [vmem:[%s166 + $0x68] sm:$0xff]
        %v203 = vld [vmem:[%s166 + $0x70] sm:$0xff]
        %v204 = vld [vmem:[%s166 + $0x78] sm:$0xff]
        %v205 = vld [vmem:[%s166 + $0x80] sm:$0xff]
        %v206 = vld [vmem:[%s166 + $0x88] sm:$0xff]
        %v207 = vld [vmem:[%s166 + $0x90] sm:$0xff]
        %v208 = vld [vmem:[%s166 + $0x98] sm:$0xff]
        %v209 = vld [vmem:[%s166 + $0xa0] sm:$0xff]
        %v210 = vld [vmem:[%s166 + $0xa8] sm:$0xff]
        %v211 = vld [vmem:[%s166 + $0xb0] sm:$0xff]
        %v212 = vld [vmem:[%s166 + $0xb8] sm:$0xff]
        %v213 = vld [vmem:[%s166 + $0xc0] sm:$0xff]
        %v214 = vld [vmem:[%s166 + $0xc8] sm:$0xff]
        %v215 = vld [vmem:[%s166 + $0xd0] sm:$0xff]
        %v216 = vld [vmem:[%s166 + $0xd8] sm:$0xff]
        %v217 = vld [vmem:[%s166 + $0xe0] sm:$0xff]
        %v218 = vld [vmem:[%s166 + $0xe8] sm:$0xff]
        %v219 = vld [vmem:[%s166 + $0xf0] sm:$0xff]
        %v220 = vld [vmem:[%s166 + $0xf8] sm:$0xff]
        %v221 = vadd.f32 %v189, %v190
        %222 = vadd.xlane.f32.xlu0 %v221
        %v223 = vpop.xlane.xlu0 %222
        %v224 = vadd.f32 %v191, %v192
        %225 = vadd.xlane.f32.xlu0 %v224
        %v226 = vpop.xlane.xlu0 %225
        %v227 = vadd.f32 %v193, %v194
        %228 = vadd.xlane.f32.xlu0 %v227
        %v229 = vpop.xlane.xlu0 %228
        %v230 = vadd.f32 %v195, %v196
        %231 = vadd.xlane.f32.xlu0 %v230
        %v232 = vpop.xlane.xlu0 %231
        %v233 = vadd.f32 %v197, %v198
        %234 = vadd.xlane.f32.xlu0 %v233
        %v235 = vpop.xlane.xlu0 %234
        %v236 = vadd.f32 %v199, %v200
        %237 = vadd.xlane.f32.xlu0 %v236
        %v238 = vpop.xlane.xlu0 %237
        %v239 = vadd.f32 %v201, %v202
        %240 = vadd.xlane.f32.xlu0 %v239
        %v241 = vpop.xlane.xlu0 %240
        %v242 = vadd.f32 %v203, %v204
        %243 = vadd.xlane.f32.xlu0 %v242
        %v244 = vpop.xlane.xlu0 %243
        %v245 = vadd.f32 %v205, %v206
        %246 = vadd.xlane.f32.xlu0 %v245
        %v247 = vpop.xlane.xlu0 %246
        %v248 = vadd.f32 %v207, %v208
        %249 = vadd.xlane.f32.xlu0 %v248
        %v250 = vpop.xlane.xlu0 %249
        %v251 = vadd.f32 %v209, %v210
        %252 = vadd.xlane.f32.xlu0 %v251
        %v253 = vpop.xlane.xlu0 %252
        %v254 = vadd.f32 %v211, %v212
        %255 = vadd.xlane.f32.xlu0 %v254
        %v256 = vpop.xlane.xlu0 %255
        %v257 = vadd.f32 %v213, %v214
        %258 = vadd.xlane.f32.xlu0 %v257
        %v259 = vpop.xlane.xlu0 %258
        %v260 = vadd.f32 %v215, %v216
        %261 = vadd.xlane.f32.xlu0 %v260
        %v262 = vpop.xlane.xlu0 %261
        %v263 = vadd.f32 %v217, %v218
        %264 = vadd.xlane.f32.xlu0 %v263
        %v265 = vpop.xlane.xlu0 %264
        %v266 = vadd.f32 %v219, %v220
        %267 = vadd.xlane.f32.xlu0 %v266
        %v268 = vpop.xlane.xlu0 %267
        %v269 = vld [vmem:[%s1] sm:$0xff]
        %v270 = vld [vmem:[%s1 + $0x8] sm:$0xff]
        %v271 = vld [vmem:[%s1 + $0x10] sm:$0xff]
        %v272 = vld [vmem:[%s1 + $0x18] sm:$0xff]
        %v273 = vld [vmem:[%s1 + $0x20] sm:$0xff]
        %v274 = vld [vmem:[%s1 + $0x28] sm:$0xff]
        %v275 = vld [vmem:[%s1 + $0x30] sm:$0xff]
        %v276 = vld [vmem:[%s1 + $0x38] sm:$0xff]
        %v277 = vld [vmem:[%s1 + $0x40] sm:$0xff]
        %v278 = vld [vmem:[%s1 + $0x48] sm:$0xff]
        %v279 = vld [vmem:[%s1 + $0x50] sm:$0xff]
        %v280 = vld [vmem:[%s1 + $0x58] sm:$0xff]
        %v281 = vld [vmem:[%s1 + $0x60] sm:$0xff]
        %v282 = vld [vmem:[%s1 + $0x68] sm:$0xff]
        %v283 = vld [vmem:[%s1 + $0x70] sm:$0xff]
        %v284 = vld [vmem:[%s1 + $0x78] sm:$0xff]
        %v285 = vld [vmem:[%s2] sm:$0xff]
        %v286 = vld [vmem:[%s2 + $0x8] sm:$0xff]
        %v287 = vld [vmem:[%s2 + $0x10] sm:$0xff]
        %v288 = vld [vmem:[%s2 + $0x18] sm:$0xff]
        %v289 = vld [vmem:[%s2 + $0x20] sm:$0xff]
        %v290 = vld [vmem:[%s2 + $0x28] sm:$0xff]
        %v291 = vld [vmem:[%s2 + $0x30] sm:$0xff]
        %v292 = vld [vmem:[%s2 + $0x38] sm:$0xff]
        %v293 = vld [vmem:[%s2 + $0x40] sm:$0xff]
        %v294 = vld [vmem:[%s2 + $0x48] sm:$0xff]
        %v295 = vld [vmem:[%s2 + $0x50] sm:$0xff]
        %v296 = vld [vmem:[%s2 + $0x58] sm:$0xff]
        %v297 = vld [vmem:[%s2 + $0x60] sm:$0xff]
        %v298 = vld [vmem:[%s2 + $0x68] sm:$0xff]
        %v299 = vld [vmem:[%s2 + $0x70] sm:$0xff]
        %v300 = vld [vmem:[%s2 + $0x78] sm:$0xff]
        %v301 = vmul.f32 %v223, 0.00390625
        %v302 = vmul.f32 %v226, 0.00390625
        %v303 = vmul.f32 %v229, 0.00390625
        %v304 = vmul.f32 %v232, 0.00390625
        %v305 = vmul.f32 %v235, 0.00390625
        %v306 = vmul.f32 %v238, 0.00390625
        %v307 = vmul.f32 %v241, 0.00390625
        %v308 = vmul.f32 %v244, 0.00390625
        %v309 = vmul.f32 %v247, 0.00390625
        %v310 = vmul.f32 %v250, 0.00390625
        %v311 = vmul.f32 %v253, 0.00390625
        %v312 = vmul.f32 %v256, 0.00390625
        %v313 = vmul.f32 %v259, 0.00390625
        %v314 = vmul.f32 %v262, 0.00390625
        %v315 = vmul.f32 %v265, 0.00390625
        %v316 = vmul.f32 %v268, 0.00390625
        %v317 = vmul.f32 %v269, %v301
        %v318 = vmul.f32 %v270, %v302
        %v319 = vmul.f32 %v271, %v303
        %v320 = vmul.f32 %v272, %v304
        %v321 = vmul.f32 %v273, %v305
        %v322 = vmul.f32 %v274, %v306
        %v323 = vmul.f32 %v275, %v307
        %v324 = vmul.f32 %v276, %v308
        %v325 = vmul.f32 %v277, %v309
        %v326 = vmul.f32 %v278, %v310
        %v327 = vmul.f32 %v279, %v311
        %v328 = vmul.f32 %v280, %v312
        %v329 = vmul.f32 %v281, %v313
        %v330 = vmul.f32 %v282, %v314
        %v331 = vmul.f32 %v283, %v315
        %v332 = vmul.f32 %v284, %v316
        %vm333 = vcmask 64512
        %v334 = vsel %vm333, %v317, 0.0
        %v335 = vsel %vm333, %v318, 0.0
        %v336 = vadd.f32 %v334, %v335
        %v337 = vsel %vm333, %v319, 0.0
        %v338 = vadd.f32 %v336, %v337
        %v339 = vsel %vm333, %v320, 0.0
        %v340 = vadd.f32 %v338, %v339
        %v341 = vsel %vm333, %v321, 0.0
        %v342 = vadd.f32 %v340, %v341
        %v343 = vsel %vm333, %v322, 0.0
        %v344 = vadd.f32 %v342, %v343
        %v345 = vsel %vm333, %v323, 0.0
        %v346 = vadd.f32 %v344, %v345
        %v347 = vsel %vm333, %v324, 0.0
        %v348 = vadd.f32 %v346, %v347
        %v349 = vsel %vm333, %v325, 0.0
        %v350 = vadd.f32 %v348, %v349
        %v351 = vsel %vm333, %v326, 0.0
        %v352 = vadd.f32 %v350, %v351
        %v353 = vsel %vm333, %v327, 0.0
        %v354 = vadd.f32 %v352, %v353
        %v355 = vsel %vm333, %v328, 0.0
        %v356 = vadd.f32 %v354, %v355
        %v357 = vsel %vm333, %v329, 0.0
        %v358 = vadd.f32 %v356, %v357
        %v359 = vsel %vm333, %v330, 0.0
        %v360 = vadd.f32 %v358, %v359
        %v361 = vsel %vm333, %v331, 0.0
        %v362 = vadd.f32 %v360, %v361
        %v363 = vsel %vm333, %v332, 0.0
        %v364 = vadd.f32 %v362, %v363
        %v365 = vrot.slane %v364, 4
        %v366 = vadd.f32 %v364, %v365
        %v367 = vrot.slane %v366, 2
        %v368 = vadd.f32 %v366, %v367
        %v369 = vrot.slane %v368, 1
        %v370 = vadd.f32 %v368, %v369
        %v371 = vmax.f32 %v370, 0.0
        %v372 = vmul.f32 %v285, %v371
        %v373 = vmul.f32 %v286, %v371
        %v374 = vmul.f32 %v287, %v371
        %v375 = vmul.f32 %v288, %v371
        %v376 = vmul.f32 %v289, %v371
        %v377 = vmul.f32 %v290, %v371
        %v378 = vmul.f32 %v291, %v371
        %v379 = vmul.f32 %v292, %v371
        %v380 = vmul.f32 %v293, %v371
        %v381 = vmul.f32 %v294, %v371
        %v382 = vmul.f32 %v295, %v371
        %v383 = vmul.f32 %v296, %v371
        %v384 = vmul.f32 %v297, %v371
        %v385 = vmul.f32 %v298, %v371
        %v386 = vmul.f32 %v299, %v371
        %v387 = vmul.f32 %v300, %v371
        %v388 = vsel %vm333, %v372, 0.0
        %389 = vadd.xlane.f32.xlu0 %v388
        %v390 = vpop.xlane.xlu0 %389
        %v391 = vsel %vm333, %v373, 0.0
        %392 = vadd.xlane.f32.xlu0 %v391
        %v393 = vpop.xlane.xlu0 %392
        %v394 = vsel %vm333, %v374, 0.0
        %395 = vadd.xlane.f32.xlu0 %v394
        %v396 = vpop.xlane.xlu0 %395
        %v397 = vsel %vm333, %v375, 0.0
        %398 = vadd.xlane.f32.xlu0 %v397
        %v399 = vpop.xlane.xlu0 %398
        %v400 = vsel %vm333, %v376, 0.0
        %401 = vadd.xlane.f32.xlu0 %v400
        %v402 = vpop.xlane.xlu0 %401
        %v403 = vsel %vm333, %v377, 0.0
        %404 = vadd.xlane.f32.xlu0 %v403
        %v405 = vpop.xlane.xlu0 %404
        %v406 = vsel %vm333, %v378, 0.0
        %407 = vadd.xlane.f32.xlu0 %v406
        %v408 = vpop.xlane.xlu0 %407
        %v409 = vsel %vm333, %v379, 0.0
        %410 = vadd.xlane.f32.xlu0 %v409
        %v411 = vpop.xlane.xlu0 %410
        %v412 = vsel %vm333, %v380, 0.0
        %413 = vadd.xlane.f32.xlu0 %v412
        %v414 = vpop.xlane.xlu0 %413
        %v415 = vsel %vm333, %v381, 0.0
        %416 = vadd.xlane.f32.xlu0 %v415
        %v417 = vpop.xlane.xlu0 %416
        %v418 = vsel %vm333, %v382, 0.0
        %419 = vadd.xlane.f32.xlu0 %v418
        %v420 = vpop.xlane.xlu0 %419
        %v421 = vsel %vm333, %v383, 0.0
        %422 = vadd.xlane.f32.xlu0 %v421
        %v423 = vpop.xlane.xlu0 %422
        %v424 = vsel %vm333, %v384, 0.0
        %425 = vadd.xlane.f32.xlu0 %v424
        %v426 = vpop.xlane.xlu0 %425
        %v427 = vsel %vm333, %v385, 0.0
        %428 = vadd.xlane.f32.xlu0 %v427
        %v429 = vpop.xlane.xlu0 %428
        %v430 = vsel %vm333, %v386, 0.0
        %431 = vadd.xlane.f32.xlu0 %v430
        %v432 = vpop.xlane.xlu0 %431
        %v433 = vsel %vm333, %v387, 0.0
        %434 = vadd.xlane.f32.xlu0 %v433
        %v435 = vpop.xlane.xlu0 %434
        %v436 = vxor.u32 %v390, 2147483648
        %v437 = vxor.u32 %v393, 2147483648
        %v438 = vxor.u32 %v396, 2147483648
        %v439 = vxor.u32 %v399, 2147483648
        %v440 = vxor.u32 %v402, 2147483648
        %v441 = vxor.u32 %v405, 2147483648
        %v442 = vxor.u32 %v408, 2147483648
        %v443 = vxor.u32 %v411, 2147483648
        %v444 = vxor.u32 %v414, 2147483648
        %v445 = vxor.u32 %v417, 2147483648
        %v446 = vxor.u32 %v420, 2147483648
        %v447 = vxor.u32 %v423, 2147483648
        %v448 = vxor.u32 %v426, 2147483648
        %v449 = vxor.u32 %v429, 2147483648
        %v450 = vxor.u32 %v432, 2147483648
        %v451 = vxor.u32 %v435, 2147483648
        %v452 = vmul.f32 %v436, 1.442695
        %v453 = vpow.pop %v452
        %v454 = vmul.f32 %v437, 1.442695
        %v455 = vpow.pop %v454
        %v456 = vmul.f32 %v438, 1.442695
        %v457 = vpow.pop %v456
        %v458 = vmul.f32 %v439, 1.442695
        %v459 = vpow.pop %v458
        %v460 = vmul.f32 %v440, 1.442695
        %v461 = vpow.pop %v460
        %v462 = vmul.f32 %v441, 1.442695
        %v463 = vpow.pop %v462
        %v464 = vmul.f32 %v442, 1.442695
        %v465 = vpow.pop %v464
        %v466 = vmul.f32 %v443, 1.442695
        %v467 = vpow.pop %v466
        %v468 = vmul.f32 %v444, 1.442695
        %v469 = vpow.pop %v468
        %v470 = vmul.f32 %v445, 1.442695
        %v471 = vpow.pop %v470
        %v472 = vmul.f32 %v446, 1.442695
        %v473 = vpow.pop %v472
        %v474 = vmul.f32 %v447, 1.442695
        %v475 = vpow.pop %v474
        %v476 = vmul.f32 %v448, 1.442695
        %v477 = vpow.pop %v476
        %v478 = vmul.f32 %v449, 1.442695
        %v479 = vpow.pop %v478
        %v480 = vmul.f32 %v450, 1.442695
        %v481 = vpow.pop %v480
        %v482 = vmul.f32 %v451, 1.442695
        %v483 = vpow.pop %v482
        %v484 = vadd.f32 %v453, 1.0
        %v485 = vadd.f32 %v455, 1.0
        %v486 = vadd.f32 %v457, 1.0
        %v487 = vadd.f32 %v459, 1.0
        %v488 = vadd.f32 %v461, 1.0
        %v489 = vadd.f32 %v463, 1.0
        %v490 = vadd.f32 %v465, 1.0
        %v491 = vadd.f32 %v467, 1.0
        %v492 = vadd.f32 %v469, 1.0
        %v493 = vadd.f32 %v471, 1.0
        %v494 = vadd.f32 %v473, 1.0
        %v495 = vadd.f32 %v475, 1.0
        %v496 = vadd.f32 %v477, 1.0
        %v497 = vadd.f32 %v479, 1.0
        %v498 = vadd.f32 %v481, 1.0
        %v499 = vadd.f32 %v483, 1.0
        %v500 = vrcp.pop %v484
        %v501 = vmul.f32 1.0, %v500
        %v502 = vrcp.pop %v485
        %v503 = vmul.f32 1.0, %v502
        %v504 = vrcp.pop %v486
        %v505 = vmul.f32 1.0, %v504
        %v506 = vrcp.pop %v487
        %v507 = vmul.f32 1.0, %v506
        %v508 = vrcp.pop %v488
        %v509 = vmul.f32 1.0, %v508
        %v510 = vrcp.pop %v489
        %v511 = vmul.f32 1.0, %v510
        %v512 = vrcp.pop %v490
        %v513 = vmul.f32 1.0, %v512
        %v514 = vrcp.pop %v491
        %v515 = vmul.f32 1.0, %v514
        %v516 = vrcp.pop %v492
        %v517 = vmul.f32 1.0, %v516
        %v518 = vrcp.pop %v493
        %v519 = vmul.f32 1.0, %v518
        %v520 = vrcp.pop %v494
        %v521 = vmul.f32 1.0, %v520
        %v522 = vrcp.pop %v495
        %v523 = vmul.f32 1.0, %v522
        %v524 = vrcp.pop %v496
        %v525 = vmul.f32 1.0, %v524
        %v526 = vrcp.pop %v497
        %v527 = vmul.f32 1.0, %v526
        %v528 = vrcp.pop %v498
        %v529 = vmul.f32 1.0, %v528
        %v530 = vrcp.pop %v499
        %v531 = vmul.f32 1.0, %v530
        %v532 = vmul.f32 %v189, %v501
        %v533 = vmul.f32 %v190, %v501
        %v534 = vmul.f32 %v191, %v503
        %v535 = vmul.f32 %v192, %v503
        %v536 = vmul.f32 %v193, %v505
        %v537 = vmul.f32 %v194, %v505
        %v538 = vmul.f32 %v195, %v507
        %v539 = vmul.f32 %v196, %v507
        %v540 = vmul.f32 %v197, %v509
        %v541 = vmul.f32 %v198, %v509
        %v542 = vmul.f32 %v199, %v511
        %v543 = vmul.f32 %v200, %v511
        %v544 = vmul.f32 %v201, %v513
        %v545 = vmul.f32 %v202, %v513
        %v546 = vmul.f32 %v203, %v515
        %v547 = vmul.f32 %v204, %v515
        %v548 = vmul.f32 %v205, %v517
        %v549 = vmul.f32 %v206, %v517
        %v550 = vmul.f32 %v207, %v519
        %v551 = vmul.f32 %v208, %v519
        %v552 = vmul.f32 %v209, %v521
        %v553 = vmul.f32 %v210, %v521
        %v554 = vmul.f32 %v211, %v523
        %v555 = vmul.f32 %v212, %v523
        %v556 = vmul.f32 %v213, %v525
        %v557 = vmul.f32 %v214, %v525
        %v558 = vmul.f32 %v215, %v527
        %v559 = vmul.f32 %v216, %v527
        %v560 = vmul.f32 %v217, %v529
        %v561 = vmul.f32 %v218, %v529
        %v562 = vmul.f32 %v219, %v531
        %v563 = vmul.f32 %v220, %v531
        %564 = vst [vmem:[%s188] sm:$0xff] %v532
        %565 = vst [vmem:[%s188 + $0x8] sm:$0xff] %v533
        %566 = vst [vmem:[%s188 + $0x10] sm:$0xff] %v534
        %567 = vst [vmem:[%s188 + $0x18] sm:$0xff] %v535
        %568 = vst [vmem:[%s188 + $0x20] sm:$0xff] %v536
        %569 = vst [vmem:[%s188 + $0x28] sm:$0xff] %v537
        %570 = vst [vmem:[%s188 + $0x30] sm:$0xff] %v538
        %571 = vst [vmem:[%s188 + $0x38] sm:$0xff] %v539
        %572 = vst [vmem:[%s188 + $0x40] sm:$0xff] %v540
        %573 = vst [vmem:[%s188 + $0x48] sm:$0xff] %v541
        %574 = vst [vmem:[%s188 + $0x50] sm:$0xff] %v542
        %575 = vst [vmem:[%s188 + $0x58] sm:$0xff] %v543
        %576 = vst [vmem:[%s188 + $0x60] sm:$0xff] %v544
        %577 = vst [vmem:[%s188 + $0x68] sm:$0xff] %v545
        %578 = vst [vmem:[%s188 + $0x70] sm:$0xff] %v546
        %579 = vst [vmem:[%s188 + $0x78] sm:$0xff] %v547
        %580 = vst [vmem:[%s188 + $0x80] sm:$0xff] %v548
        %581 = vst [vmem:[%s188 + $0x88] sm:$0xff] %v549
        %582 = vst [vmem:[%s188 + $0x90] sm:$0xff] %v550
        %583 = vst [vmem:[%s188 + $0x98] sm:$0xff] %v551
        %584 = vst [vmem:[%s188 + $0xa0] sm:$0xff] %v552
        %585 = vst [vmem:[%s188 + $0xa8] sm:$0xff] %v553
        %586 = vst [vmem:[%s188 + $0xb0] sm:$0xff] %v554
        %587 = vst [vmem:[%s188 + $0xb8] sm:$0xff] %v555
        %588 = vst [vmem:[%s188 + $0xc0] sm:$0xff] %v556
        %589 = vst [vmem:[%s188 + $0xc8] sm:$0xff] %v557
        %590 = vst [vmem:[%s188 + $0xd0] sm:$0xff] %v558
        %591 = vst [vmem:[%s188 + $0xd8] sm:$0xff] %v559
        %592 = vst [vmem:[%s188 + $0xe0] sm:$0xff] %v560
        %593 = vst [vmem:[%s188 + $0xe8] sm:$0xff] %v561
        %594 = vst [vmem:[%s188 + $0xf0] sm:$0xff] %v562
        %595 = vst [vmem:[%s188 + $0xf8] sm:$0xff] %v563
        %s596 = sand.u32 %s96, 1
        %s597 = scalar_lea.sflag [#allocation4], %s596
        %s598 = sand.u32 %s96, 1
        %s599 = smul.addr %s598, 256
        %s600 = scalar_lea.vmem [#allocation5], %s599
        // Predicated region
        $region37: #{tpu_custom_call.1} parent=31 // pred_check
          %p601 = pneg %p106
        $region38: #{tpu_custom_call.1} parent=31 // pred_check_branch
          %603 = sbr.rel (%p601) target = $region40
        $region39: #{tpu_custom_call.1} parent=31 // pred_region
          %s605 = ssub.s32 4096, 4096
          %606 = vsyncadd %s597, %s605
          %s607 = smul.addr %s20, 32
          %s608 = smul.addr %s607, 128
          %s609 = scalar_lea.hbm %s3, %s608
          %s610 = sshll.u32 %s600, 4
          %s611 = int_to_ptr.vmem [resolvable:$true] %s610
          %616 = dma.vmem_to_hbm [thread:$0]  %s611, 4096, %s609, %s597, 256, 256, 16
        $region40: #{tpu_custom_call.1} parent=31 // pred_fallthru
          _
      $region32: #{tpu_custom_call.1} parent=5 // pred_fallthru
        _
      %p617 = scmp.le.s32.totalorder 2, %s15
      // Predicated region
      $region41: #{tpu_custom_call.1} parent=5 // pred_check
        %p618 = pneg %p617
      $region42: #{tpu_custom_call.1} parent=5 // pred_check_branch
        %620 = sbr.rel (%p618) target = $region44
      $region43: #{tpu_custom_call.1} parent=5 // pred_region
        %s621 = ssub.s32 %s15, 2
        // Predicated region
        $region45: #{tpu_custom_call.1} parent=43 // pred_check
          %p622 = pneg %p112
        $region46: #{tpu_custom_call.1} parent=43 // pred_check_branch
          %624 = sbr.rel (%p622) target = $region48
        $region47: #{tpu_custom_call.1} parent=43 // pred_region
          %s625 = sand.u32 %s97, 1
          %s626 = scalar_lea.sflag [#allocation4], %s625
          %s627 = sand.u32 %s97, 1
          %s628 = smul.addr %s627, 256
          %s629 = scalar_lea.vmem [#allocation5], %s628
          %630 = dma.done %s626, 4096
        $region48: #{tpu_custom_call.1} parent=43 // pred_fallthru
          _
      $region44: #{tpu_custom_call.1} parent=5 // pred_fallthru
        _
    $region6: #{tpu_custom_call.1} parent=1 // loop_footer
      %s19 = sadd.s32 1, %s15
    $region7: #{tpu_custom_call.1} parent=1 // loop_footer_branch
      %14 = sbr.rel target = $region3
    $region8: #{tpu_custom_call.1} parent=1 // loop_exit
      _
    %631 = vsyncpa [#allocation3], 1
    %s632 = scalar_lea.sflag [#allocation3], 1
    %633 = vsyncpa %s632, 1
    %634 = vsyncpa [#allocation4], 1
    %s635 = scalar_lea.sflag [#allocation4], 1
    %636 = vsyncpa %s635, 1

</llo_original>
